<compile_context>
chip_gen: v7x
topology: tpu7x:2x2x1
jax: 0.10.0
libtpu: 0.0.40
codegen_flags: <defaults>
</compile_context>

<pallas_src>
import jax
import jax.numpy as jnp
from jax.experimental import pallas as pl
from jax.experimental.pallas import tpu as pltpu

DEFAULT_QBATCHNORM_PREC = 12

_TARGET_TILE_BYTES = 4 << 20     # ~4 MiB x-tile per grid step (review: amortize 0.35us)
_MAX_BLOCK_ROWS = 4096           # bounds lane-padded (br,2)->(br,128) param buffers


# ----------------------------------------------------------------------------
# Pallas kernel: per-row affine  out[r, :] = p[r,0] * x[r, :] + p[r,1]
# ----------------------------------------------------------------------------
def _qbn_affine_kernel(p_ref, x_ref, o_ref):
    x = x_ref[...].astype(jnp.float32)      # stream native dtype, compute in f32
    k = p_ref[:, 0:1]                       # (br, 1) f32 — broadcast across lanes
    l = p_ref[:, 1:2]                       # (br, 1) f32
    o_ref[...] = (k * x + l).astype(o_ref.dtype)


def _sublane_multiple(dtype) -> int:
    """Native sublane packing multiple for the dtype (8 f32 / 16 bf16 / 32 int8)."""
    return {4: 8, 2: 16, 1: 32}.get(jnp.dtype(dtype).itemsize, 8)


def _tensorcores_per_chip() -> int:
    """Dual-TC (v7x) vs single-TC (v5e/v6e) — drives the grid-step floor."""
    try:
        kind = (getattr(jax.devices()[0], "device_kind", "") or "").lower()
        if "v7" in kind:
            return 2
    except Exception:
        pass
    return 1


def _choose_blocks(rows: int, hw: int, itemsize: int, sublane: int, num_tc: int):
    """Pick (block_rows, block_hw): biggest ~4 MiB tile that fits, sublane-aligned,
    with a >=4-step floor only on dual-TC chips (no forced split on v5e/v6e)."""
    # Lane-dim block: keep full hw unless a single row already exceeds the target.
    if hw * itemsize > _TARGET_TILE_BYTES:
        bhw = max(128, (_TARGET_TILE_BYTES // itemsize) // 128 * 128)
        bhw = min(bhw, hw)
    else:
        bhw = hw

    row_bytes = max(bhw * itemsize, 1)
    br = max(sublane, (_TARGET_TILE_BYTES // row_bytes) // sublane * sublane)
    br = min(br, _MAX_BLOCK_ROWS)
    br = min(br, rows)                       # == rows (full dim) is always legal

    if num_tc >= 2:
        # Dual-TC: want >= 4 grid steps when rows permit so each core gets a
        # pipelined stream (>= 2 steps per core).
        steps = pl.cdiv(rows, br) * pl.cdiv(hw, bhw)
        if steps < 4:
            cap = ((rows - 1) // 3) // sublane * sublane   # largest br with cdiv>=4
            if cap >= sublane:
                br = min(br, cap)
    return br, bhw


def pact_qbn_affine(x2d, params2):
    """out[r, :] = params2[r, 0] * x2d[r, :] + params2[r, 1] via Pallas."""
    rows, hw = x2d.shape
    itemsize = x2d.dtype.itemsize
    sublane = _sublane_multiple(x2d.dtype)
    num_tc = _tensorcores_per_chip()
    br, bhw = _choose_blocks(rows, hw, itemsize, sublane, num_tc)
    grid = (pl.cdiv(rows, br), pl.cdiv(hw, bhw))

    # Explicit scoped-VMEM budget: double-buffered x in + out tiles, plus the
    # lane-padded (br,2)->(br,128) param tile, plus headroom.
    x_tile = br * bhw * itemsize
    p_tile = br * 128 * 4
    vmem_needed = 4 * x_tile + 2 * p_tile + (4 << 20)
    vmem_limit = int(min(max(vmem_needed, 32 << 20), 48 << 20))

    cost = pl.CostEstimate(
        flops=2 * rows * hw,
        transcendentals=0,
        bytes_accessed=2 * rows * hw * itemsize + 2 * rows * 2 * 4,
    )

    return pl.pallas_call(
        _qbn_affine_kernel,
        out_shape=jax.ShapeDtypeStruct((rows, hw), x2d.dtype),
        grid=grid,
        in_specs=[
            pl.BlockSpec((br, 2), lambda i, j: (i, 0)),     # packed kappa|lamda
            pl.BlockSpec((br, bhw), lambda i, j: (i, j)),   # x tile (native dtype)
        ],
        out_specs=pl.BlockSpec((br, bhw), lambda i, j: (i, j)),
        compiler_params=pltpu.CompilerParams(
            dimension_semantics=("parallel", "parallel"),
            vmem_limit_bytes=vmem_limit,
        ),
        cost_estimate=cost,
    )(params2, x2d)
    # TODO(synk): when hw % 128 != 0 (conv tails like 49/196) the output lane dim forces
    # masked partial stores; a 128-multiple body + small epilogue tiling would recover
    # the lane-dense store path.


# ----------------------------------------------------------------------------
# Parameter quantization (O(C) work, plain JAX) — nemo.pact semantics
# ----------------------------------------------------------------------------
def _pact_quantize_signed_inference(w, eps, clip):
    """pact_quantize_signed_inference (train_loop=True branch), f32."""
    wq = w + eps * 0.5
    wq = jnp.floor(wq / eps) * eps
    alpha = jnp.ceil(clip / eps) * eps
    beta = jnp.floor(clip / eps) * eps
    return jnp.clip(wq, -alpha, beta + eps)


def _quantize_param(p, bits):
    """abs-max scaled signed quantization; guarded against the all-zero param case
    (PyTorch original would produce inf/NaN there; zeros are the exact quantization)."""
    p_int = jnp.max(jnp.abs(p))
    eps = 2.0 * p_int / (2.0 ** bits - 1.0)
    eps_safe = jnp.where(eps > 0, eps, 1.0)
    clip = jnp.floor(p_int / eps_safe) * eps_safe
    q = _pact_quantize_signed_inference(p, eps_safe, clip)
    return jnp.where(eps > 0, q, p)


class PACTQuantizedBatchNormNd:
    """JAX/Pallas port of nemo.quant.pact.PACT_QuantizedBatchNormNd forward
    (default branch: statistics_only=False, hardened=False, onnx_qd_output=False)."""

    def __init__(self, precision_bits=DEFAULT_QBATCHNORM_PREC, kappa=None,
                 lamda=None, nb_channels=1, statistics_only=False, dimensions=2):
        if dimensions == 2:
            param_shape = lambda n: (1, n, 1, 1)
        elif dimensions == 1:
            param_shape = lambda n: (1, n, 1)
        else:
            raise ValueError("dimensions must be 1 or 2")
        self.bits_kappa = precision_bits
        self.bits_lamda = precision_bits
        if kappa is None:
            self.kappa = jnp.zeros(param_shape(nb_channels), jnp.float32)
        else:
            kappa = jnp.asarray(kappa, jnp.float32)
            self.kappa = kappa.reshape(param_shape(kappa.size))
        if lamda is None:
            self.lamda = jnp.zeros(param_shape(nb_channels), jnp.float32)
        else:
            lamda = jnp.asarray(lamda, jnp.float32)
            self.lamda = lamda.reshape(param_shape(lamda.size))
        self.statistics_only = statistics_only
        self.hardened = False
        self._q_params = None     # cached quantized (kappa, lamda), flat f32
        self._packed_rows = {}    # cache: batch size n -> packed (n*C, 2) params
        # TODO(synk): harden_weights(), get_output_eps() eps bookkeeping, the
        # onnx_qd_output export branch and the statistics_only running min/max
        # buffers are stateful/export-time features, not the forward hot path.

    def _effective_params(self):
        kappa = self.kappa.ravel().astype(jnp.float32)   # (C,)
        lamda = self.lamda.ravel().astype(jnp.float32)   # (C,)
        if (not self.statistics_only) and (not self.hardened):
            if self._q_params is None:
                self._q_params = (
                    _quantize_param(kappa, self.bits_kappa),
                    _quantize_param(lamda, self.bits_lamda),
                )
            return self._q_params
        return kappa, lamda
        # TODO(synk): statistics_only min/max running-stat update not implemented
        # (stateful side effect); the affine output itself is still computed.

    def __call__(self, x):
        kappa, lamda = self._effective_params()

        n, c = x.shape[0], x.shape[1]
        hw = 1
        for d in x.shape[2:]:
            hw *= d

        x2d = x.reshape(n * c, hw)          # free contiguous-merge view

        packed = self._packed_rows.get(n)
        if packed is None:
            k_rows = jnp.tile(kappa, n)     # row r = b*C + c  ->  kappa[c]
            l_rows = jnp.tile(lamda, n)
            packed = jnp.stack([k_rows, l_rows], axis=1)   # (n*C, 2) f32
            self._packed_rows[n] = packed

        out2d = pact_qbn_affine(x2d, packed)
        return out2d.reshape(x.shape)


# ----------------------------------------------------------------------------
# Demo / self-check
# ----------------------------------------------------------------------------
if __name__ == "__main__":
    key = jax.random.PRNGKey(0)
    kx, kk, kl = jax.random.split(key, 3)
    N, C, H, W = 2, 4, 16, 16

    x = jax.random.normal(kx, (N, C, H, W), dtype=jnp.float32)
    kappa = jax.random.uniform(kk, (C,), jnp.float32, minval=0.5, maxval=2.0)
    lamda = jax.random.normal(kl, (C,), jnp.float32) * 0.3

    m = PACTQuantizedBatchNormNd(precision_bits=DEFAULT_QBATCHNORM_PREC,
                                 kappa=kappa, lamda=lamda,
                                 nb_channels=C, dimensions=2)
    y = m(x)
    jax.block_until_ready(y)

    # Pure-JAX reference of the exact PyTorch forward (default branch).
    def ref_forward(x, kappa, lamda, bits=DEFAULT_QBATCHNORM_PREC):
        k = kappa.astype(jnp.float32)
        l = lamda.astype(jnp.float32)
        k_int = jnp.max(jnp.abs(k))
        l_int = jnp.max(jnp.abs(l))
        eps_k = 2.0 * k_int / (2.0 ** bits - 1.0)
        eps_l = 2.0 * l_int / (2.0 ** bits - 1.0)
        k_clip = jnp.floor(k_int / eps_k) * eps_k
        l_clip = jnp.floor(l_int / eps_l) * eps_l
        kq = _pact_quantize_signed_inference(k, eps_k, k_clip)
        lq = _pact_quantize_signed_inference(l, eps_l, l_clip)
        out = kq.reshape(1, -1, 1, 1) * x.astype(jnp.float32) + lq.reshape(1, -1, 1, 1)
        return out.astype(x.dtype)

    ref = ref_forward(x, kappa, lamda)

    assert y.shape == x.shape and y.dtype == x.dtype
    assert jnp.allclose(y, ref, atol=1e-6, rtol=1e-6), "Pallas output != reference"

    # Second call exercises the cached-parameter path.
    y2 = m(x)
    jax.block_until_ready(y2)
    assert jnp.allclose(y2, ref, atol=1e-6, rtol=1e-6)

    print("KERNEL_OK")
</pallas_src>

<mosaic_0001>
module attributes {stable_mosaic.version = 11 : i64} {
  func.func @_qbn_affine_kernel(%arg0: i32, %arg1: i32, %arg2: memref<8x2xf32, #tpu.memory_space<vmem>>, %arg3: memref<8x256xf32, #tpu.memory_space<vmem>>, %arg4: memref<8x256xf32, #tpu.memory_space<vmem>>) attributes {dimension_semantics = [#tpu.dimension_semantics<parallel>, #tpu.dimension_semantics<parallel>], iteration_bounds = array<i64: 1, 1>, scalar_prefetch = 0 : i64, scratch_operands = 0 : i64, tpu.core_type = #tpu.core_type<tc>, window_params = [{transform_indices = @transform_0, window_bounds = array<i64: 8, 2>}, {transform_indices = @transform_1, window_bounds = array<i64: 8, 256>}, {transform_indices = @transform_2, window_bounds = array<i64: 8, 256>}]} {
    %c0 = arith.constant 0 : index
    %c0_0 = arith.constant 0 : index
    %0 = vector.load %arg3[%c0, %c0_0] : memref<8x256xf32, #tpu.memory_space<vmem>>, vector<8x256xf32>
    %c0_1 = arith.constant 0 : index
    %c0_2 = arith.constant 0 : index
    %1 = vector.load %arg2[%c0_1, %c0_2] : memref<8x2xf32, #tpu.memory_space<vmem>>, vector<8x1xf32>
    %c0_3 = arith.constant 0 : index
    %c1 = arith.constant 1 : index
    %2 = vector.load %arg2[%c0_3, %c1] : memref<8x2xf32, #tpu.memory_space<vmem>>, vector<8x1xf32>
    %3 = vector.broadcast %1 : vector<8x1xf32> to vector<8x256xf32>
    %4 = arith.mulf %3, %0 : vector<8x256xf32>
    %5 = vector.broadcast %2 : vector<8x1xf32> to vector<8x256xf32>
    %6 = arith.addf %4, %5 : vector<8x256xf32>
    %c0_4 = arith.constant 0 : index
    %c0_5 = arith.constant 0 : index
    %7 = vector.load %arg4[%c0_4, %c0_5] : memref<8x256xf32, #tpu.memory_space<vmem>>, vector<8x256xf32>
    tpu.vector_store %arg4[%c0_4, %c0_5], %6 {strides = array<i32>} : memref<8x256xf32, #tpu.memory_space<vmem>>, vector<8x256xf32>,
    return
  }
  func.func @transform_0(%arg0: i32, %arg1: i32) -> (i32, i32) {
    %c0_i32 = arith.constant 0 : i32
    %c0_i32_0 = arith.constant 0 : i32
    return %arg0, %c0_i32 : i32, i32
  }
  func.func @transform_1(%arg0: i32, %arg1: i32) -> (i32, i32) {
    %c0_i32 = arith.constant 0 : i32
    return %arg0, %arg1 : i32, i32
  }
  func.func @transform_2(%arg0: i32, %arg1: i32) -> (i32, i32) {
    %c0_i32 = arith.constant 0 : i32
    return %arg0, %arg1 : i32, i32
  }
}

</mosaic_0001>

<llo_original>
// kernel: tpu_custom_call.1
$region0: #{tpu_custom_call.1}
  #allocation0 [shape = 'u32[]', space=smem, size = 0x4, offset = 0x4, fixed_abs, tag = 'smem constant byte address 0x4 - core index']
  #allocation1 [shape = 'u32[144,128]{1,0:T(1,128)}', space=vmem, size = 0x12000, scoped, tag = 'internal scratch']
  %s0 = inlined_call_operand.vmem [shape: f32[8,2], index: 0, kind: input, shape index: {}]
  %s1 = inlined_call_operand.hbm [shape: f32[8,256], index: 1, kind: input, shape index: {}]
  %s2 = inlined_call_operand.hbm [shape: f32[8,256], index: 2, kind: output, shape index: {}]
  %s3 = sld [smem:[#allocation0]]
  $region22: #{tpu_custom_call.1} parent=0
    _
  %s5 = ssub.s32 1, %s3
  %s6 = scalar_select 0, %s5, %s3
  $region1: #{tpu_custom_call.1} parent=0
    #allocation2 [shape = 'u8[8192]{0}', space=vmem, size = 0x2000, scoped, tag = 'input window, operand 1, single buffered']
    #allocation3 [shape = 's32[1]{0}', space=sflag, size = 0x4, scoped, tag = 'scoped memory for tpu_custom_call.1']
    #allocation4 [shape = 's32[1]{0}', space=sflag, size = 0x4, scoped, tag = 'scoped memory for tpu_custom_call.1']
    #allocation5 [shape = 'u8[8192]{0}', space=vmem, size = 0x2000, scoped, tag = 'output window, operand 0, single buffered']
    %7 = vsyncpa [#allocation3], 0
    %8 = vsyncpa [#allocation4], 0
    // Predicated region
    $region2: #{tpu_custom_call.1} parent=1 // pred_check
      _
    $region3: #{tpu_custom_call.1} parent=1 // pred_check_branch
      %10 = sbr.rel (0) target = $region5
    $region4: #{tpu_custom_call.1} parent=1 // pred_region
      _
    $region5: #{tpu_custom_call.1} parent=1 // pred_fallthru
      _
    // Predicated region
    $region6: #{tpu_custom_call.1} parent=1 // pred_check
      _
    $region7: #{tpu_custom_call.1} parent=1 // pred_check_branch
      %12 = sbr.rel (0) target = $region9
    $region8: #{tpu_custom_call.1} parent=1 // pred_region
      %s14 = ssub.s32 256, 256
      %15 = vsyncadd [#allocation3], %s14
      %s17 = sshll.u32 [#allocation2], 4
      %s18 = int_to_ptr.vmem [resolvable:$true] %s17
      %20 = dma.hbm_to_vmem [thread:$0]  %s1, 256, %s18, [#allocation3]
    $region9: #{tpu_custom_call.1} parent=1 // pred_fallthru
      _
    // Predicated region
    $region10: #{tpu_custom_call.1} parent=1 // pred_check
      _
    $region11: #{tpu_custom_call.1} parent=1 // pred_check_branch
      %22 = sbr.rel (0) target = $region13
    $region12: #{tpu_custom_call.1} parent=1 // pred_region
      %23 = dma.done [#allocation3], 256
    $region13: #{tpu_custom_call.1} parent=1 // pred_fallthru
      _
    %v24 = vld [vmem:[#allocation2] sm:$0xff]
    %v25 = vld [vmem:[#allocation2 + $0x8] sm:$0xff]
    %v26 = vld [vmem:[%s0] sm:$0xff]
    %28 = vset.pattern.permute.xlu0 0
    %29 = vperm.xlu0 %28, %v26
    %v30 = vpop.permute.xlu0 %29
    %v32 = vmul.f32 %v30, %v24
    %v33 = vmul.f32 %v30, %v25
    %34 = vset.pattern.permute.xlu0 1
    %35 = vperm.xlu0 %34, %v26
    %v36 = vpop.permute.xlu0 %35
    %v38 = vadd.f32 %v32, %v36
    %v39 = vadd.f32 %v33, %v36
    %40 = vst [vmem:[#allocation5] sm:$0xff] %v38
    %41 = vst [vmem:[#allocation5 + $0x8] sm:$0xff] %v39
    // Predicated region
    $region14: #{tpu_custom_call.1} parent=1 // pred_check
      _
    $region15: #{tpu_custom_call.1} parent=1 // pred_check_branch
      %43 = sbr.rel (0) target = $region17
    $region16: #{tpu_custom_call.1} parent=1 // pred_region
      %s45 = ssub.s32 256, 256
      %46 = vsyncadd [#allocation4], %s45
      %s48 = sshll.u32 [#allocation5], 4
      %s49 = int_to_ptr.vmem [resolvable:$true] %s48
      %51 = dma.vmem_to_hbm [thread:$0]  %s49, 256, %s2, [#allocation4]
    $region17: #{tpu_custom_call.1} parent=1 // pred_fallthru
      _
    // Predicated region
    $region18: #{tpu_custom_call.1} parent=1 // pred_check
      _
    $region19: #{tpu_custom_call.1} parent=1 // pred_check_branch
      %53 = sbr.rel (0) target = $region21
    $region20: #{tpu_custom_call.1} parent=1 // pred_region
      %54 = dma.done [#allocation4], 256
    $region21: #{tpu_custom_call.1} parent=1 // pred_fallthru
      _
    %55 = vsyncpa [#allocation3], 1
    %56 = vsyncpa [#allocation4], 1

</llo_original>
